<compile_context>
chip_gen: v7x
topology: tpu7x:2x2x1
jax: 0.10.0
libtpu: 0.0.40
codegen_flags: <defaults>
</compile_context>

<pallas_src>
import functools
from math import gcd

import jax
import jax.numpy as jnp
from jax.experimental import pallas as pl
from jax.experimental.pallas import tpu as pltpu


def _lcm(a, b):
    return a * b // gcd(a, b)


def _forecaster_kernel(xe_ref, xm_ref, xd_ref,
                       wx_ref, wm_ref, benc_ref,
                       wt_ref, wout_ref, wdec_ref, bout_ref,
                       o_ref, *, Bb, L, P, C):
    # xe_ref: [Bb*L, E] bf16   xm_ref: [Bb*L, T] bf16   xd_ref: [Bb*P, Din] bf16
    # o_ref : [Bb*P, C]  f32
    # ---- Encoder projection: one tall MXU matmul over Bb*L rows. ----
    h = jnp.dot(xe_ref[...], wx_ref[...], preferred_element_type=jnp.float32)
    h = h + jnp.dot(xm_ref[...], wm_ref[...], preferred_element_type=jnp.float32)
    h = jnp.maximum(h + benc_ref[...], 0.0)                  # [Bb*L, D] f32

    # ---- Output-channel projection FIRST (associativity reorder):
    #      single tall K=D contraction instead of Bb batched D-matmuls. ----
    u = jnp.dot(h.astype(wout_ref.dtype), wout_ref[...],
                preferred_element_type=jnp.float32)          # [Bb*L, C] f32

    # ---- Temporal mix L -> P: tiny batched matmul (C lanes), f32. ----
    u3 = u.reshape(Bb, L, C)
    wt = jnp.broadcast_to(wt_ref[...].astype(jnp.float32), (Bb, P, L))
    z = jnp.einsum('bpl,blc->bpc', wt, u3,
                   preferred_element_type=jnp.float32)       # [Bb, P, C] f32
    z = z.reshape(Bb * P, C)

    # ---- Decoder residual + bias: two dots summed in f32 (no lane concat). ----
    y = z + jnp.dot(xd_ref[...], wdec_ref[...],
                    preferred_element_type=jnp.float32)
    o_ref[...] = (y + bout_ref[...]).astype(o_ref.dtype)


def _tpu_budget_and_cores():
    """Generation-aware per-step VMEM budget and TensorCore count."""
    vmem_cap, cores = 128 << 20, 1
    try:
        info = pltpu.get_tpu_info()
        vmem_cap = int(getattr(info, 'vmem_capacity_bytes', vmem_cap))
        for name in ('tensorcore_count', 'num_cores', 'core_count',
                     'num_tensorcores'):
            v = getattr(info, name, None)
            if v:
                cores = int(v)
                break
    except Exception:
        pass
    # ~40 MiB working set on 128 MiB parts (v5e/v6e), ~21 MiB on 64 MiB (v7x).
    budget = min(40 << 20, max(8 << 20, vmem_cap // 3))
    return vmem_cap, budget, max(1, cores)


def _choose_batch_block(B, bb_cap, cores, L, P):
    """Pick the batch-block size Bb.  Returns (Bb, Bpad, num_blocks)."""
    bb_cap = max(1, min(B, bb_cap))
    if cores >= 2 and B >= 2:
        # Keep >=2 grid blocks only when there are >=2 TensorCores to feed.
        bb_cap = max(1, min(bb_cap, B // 2))
    if bb_cap >= B:
        return B, B, 1                          # single block == full array
    # Multi-block: (Bb*L, Bb*P) must stay 8-aligned in the sublane dim.
    align = _lcm(8 // gcd(L, 8), 8 // gcd(P, 8))
    bb_cap = max(align, (bb_cap // align) * align)
    best, bb = None, bb_cap
    while bb >= align:
        if B % bb == 0:
            best = bb
            break
        bb -= align
    if best is not None and best * 2 >= bb_cap:
        return best, B, B // best               # divisor of B: no padding round trip
    nb = -(-B // bb_cap)
    return bb_cap, nb * bb_cap, nb              # ragged tail: pad the batch


class PallasTimeSeriesForecaster:
    """Minimal concrete forecaster matching BaseTimeSeriesForecaster's contract."""

    def __init__(self, configs: dict):
        self.task_name = configs.get('task_name', 'long_term_forecast')
        self.seq_len = configs.get('seq_len', 96)
        self.pred_len = configs.get('pred_len', 24)
        self.label_len = configs.get('label_len', 48)
        self.enc_in = configs.get('enc_in', 7)
        self.dec_in = configs.get('dec_in', 7)
        self.c_out = configs.get('c_out', 7)
        self.d_model = configs.get('d_model', 512)
        self.time_feats = configs.get('time_features', 4)

        # Deterministic parameter init (synthetic; no checkpoint loading).
        key = jax.random.PRNGKey(0)
        k1, k2, k3, k4, k5, k6, k7 = jax.random.split(key, 7)
        s = 0.1
        self.W_enc_x = (s * jax.random.normal(k1, (self.enc_in, self.d_model))
                        ).astype(jnp.bfloat16)
        self.W_enc_m = (s * jax.random.normal(k2, (self.time_feats, self.d_model))
                        ).astype(jnp.bfloat16)
        self.b_enc = (s * jax.random.normal(k3, (1, self.d_model))).astype(jnp.float32)
        self.W_time = (s * jax.random.normal(k4, (self.pred_len, self.seq_len))
                       ).astype(jnp.bfloat16)
        self.W_out = (s * jax.random.normal(k5, (self.d_model, self.c_out))
                      ).astype(jnp.bfloat16)
        self.W_dec = (s * jax.random.normal(k6, (self.dec_in, self.c_out))
                      ).astype(jnp.bfloat16)
        self.b_out = (s * jax.random.normal(k7, (1, self.c_out))).astype(jnp.float32)

    # TODO(synk): uncertainty/sampling/metadata methods of the abstract base are
    # host-side bookkeeping with no kernel equivalent; x_mark_dec and mask are
    # unused by this minimal linear head.
    def forward(self, x_enc, x_mark_enc, x_dec, x_mark_dec, mask=None):
        B = x_enc.shape[0]
        L, P, C, D = self.seq_len, self.pred_len, self.c_out, self.d_model
        E, T, Din = self.enc_in, self.time_feats, self.dec_in

        vmem_cap, budget, cores = _tpu_budget_and_cores()

        # Per-batch-element VMEM working set (double-buffered I/O + intermediates).
        bytes_per_b = (L * D * 6                           # h (f32) + bf16 copy
                       + L * C * 4 + 2 * P * C * 4         # u / z intermediates (f32)
                       + 2 * (L * (E + T) + P * Din) * 2   # dbl-buffered bf16 inputs
                       + 2 * P * C * 4)                    # dbl-buffered f32 output
        weight_bytes = ((E + T) * D + P * L + D * C + Din * C) * 2 + (D + C) * 4
        bb_cap = max(1, (budget - 2 * weight_bytes) // bytes_per_b)
        bb_cap = min(bb_cap, 128)      # bound batched-einsum unroll / code size

        Bb, Bpad, nb = _choose_batch_block(B, bb_cap, cores, L, P)

        # bf16 activations at the boundary; accumulation stays f32 in-kernel.
        cast = lambda a: a.astype(jnp.bfloat16)
        xe = cast(x_enc).reshape(B * L, E)                  # free reshape
        xm = cast(x_mark_enc).reshape(B * L, T)
        xd = cast(x_dec[:, x_dec.shape[1] - P:, :]).reshape(B * P, Din)  # tail only
        if Bpad != B:
            xe = jnp.pad(xe, ((0, (Bpad - B) * L), (0, 0)))
            xm = jnp.pad(xm, ((0, (Bpad - B) * L), (0, 0)))
            xd = jnp.pad(xd, ((0, (Bpad - B) * P), (0, 0)))

        vmem_limit = int(Bb * bytes_per_b + 2 * weight_bytes + (8 << 20))
        vmem_limit = max(16 << 20, min(vmem_limit, int(vmem_cap * 0.9)))

        kernel = functools.partial(_forecaster_kernel, Bb=Bb, L=L, P=P, C=C)
        full2d = lambda arr: pl.BlockSpec(arr.shape, lambda b: (0, 0))

        out = pl.pallas_call(
            kernel,
            out_shape=jax.ShapeDtypeStruct((Bpad * P, C), jnp.float32),
            grid_spec=pltpu.PrefetchScalarGridSpec(
                num_scalar_prefetch=0,
                grid=(nb,),
                in_specs=[
                    pl.BlockSpec((Bb * L, E), lambda b: (b, 0)),
                    pl.BlockSpec((Bb * L, T), lambda b: (b, 0)),
                    pl.BlockSpec((Bb * P, Din), lambda b: (b, 0)),
                    full2d(self.W_enc_x),
                    full2d(self.W_enc_m),
                    full2d(self.b_enc),
                    full2d(self.W_time),
                    full2d(self.W_out),
                    full2d(self.W_dec),
                    full2d(self.b_out),
                ],
                out_specs=pl.BlockSpec((Bb * P, C), lambda b: (b, 0)),
            ),
            compiler_params=pltpu.CompilerParams(
                dimension_semantics=("parallel",),
                vmem_limit_bytes=vmem_limit),
        )(xe, xm, xd,
          self.W_enc_x, self.W_enc_m, self.b_enc,
          self.W_time, self.W_out, self.W_dec, self.b_out)

        out = out.reshape(Bpad, P, C)
        return out[:B] if Bpad != B else out

    def forward_reference(self, x_enc, x_mark_enc, x_dec, x_mark_dec):
        # Pure-JAX reference (original operation order), bf16-rounded operands, f32 math.
        rf = lambda a: a.astype(jnp.bfloat16).astype(jnp.float32)
        xe, xm = rf(x_enc), rf(x_mark_enc)
        xd = rf(x_dec)[:, -self.pred_len:, :]
        Wx = self.W_enc_x.astype(jnp.float32)
        Wm = self.W_enc_m.astype(jnp.float32)
        Wt = self.W_time.astype(jnp.float32)
        Wo = self.W_out.astype(jnp.float32)
        Wd = self.W_dec.astype(jnp.float32)
        h = jnp.maximum(jnp.einsum('ble,ed->bld', xe, Wx)
                        + jnp.einsum('blt,td->bld', xm, Wm) + self.b_enc, 0.0)
        z = jnp.einsum('pl,bld->bpd', Wt, h)
        return (jnp.einsum('bpd,dc->bpc', z, Wo)
                + jnp.einsum('bpk,kc->bpc', xd, Wd) + self.b_out)


if __name__ == "__main__":
    configs = dict(seq_len=16, pred_len=8, label_len=4,
                   enc_in=4, dec_in=4, c_out=4, d_model=32, time_features=4)
    model = PallasTimeSeriesForecaster(configs)

    key = jax.random.PRNGKey(0)
    k1, k2, k3, k4 = jax.random.split(key, 4)
    B = 2
    dec_len = configs['label_len'] + configs['pred_len']
    x_enc = jax.random.normal(k1, (B, configs['seq_len'], configs['enc_in']), jnp.float32)
    x_mark_enc = jax.random.normal(k2, (B, configs['seq_len'], configs['time_features']), jnp.float32)
    x_dec = jax.random.normal(k3, (B, dec_len, configs['dec_in']), jnp.float32)
    x_mark_dec = jax.random.normal(k4, (B, dec_len, configs['time_features']), jnp.float32)

    out = model.forward(x_enc, x_mark_enc, x_dec, x_mark_dec)
    out = jax.block_until_ready(out)

    ref = model.forward_reference(x_enc, x_mark_enc, x_dec, x_mark_dec)
    assert out.shape == (B, configs['pred_len'], configs['c_out'])
    assert jnp.allclose(out, ref, atol=3e-2, rtol=3e-2), \
        float(jnp.max(jnp.abs(out - ref)))

    print("KERNEL_OK")
</pallas_src>

<mosaic_0001>
module attributes {stable_mosaic.version = 11 : i64} {
  func.func @_forecaster_kernel(%arg0: i32, %arg1: memref<32x4xbf16, #tpu.memory_space<vmem>>, %arg2: memref<32x4xbf16, #tpu.memory_space<vmem>>, %arg3: memref<16x4xbf16, #tpu.memory_space<vmem>>, %arg4: memref<4x32xbf16, #tpu.memory_space<vmem>>, %arg5: memref<4x32xbf16, #tpu.memory_space<vmem>>, %arg6: memref<1x32xf32, #tpu.memory_space<vmem>>, %arg7: memref<8x16xbf16, #tpu.memory_space<vmem>>, %arg8: memref<32x4xbf16, #tpu.memory_space<vmem>>, %arg9: memref<4x4xbf16, #tpu.memory_space<vmem>>, %arg10: memref<1x4xf32, #tpu.memory_space<vmem>>, %arg11: memref<16x4xf32, #tpu.memory_space<vmem>>) attributes {dimension_semantics = [#tpu.dimension_semantics<parallel>], iteration_bounds = array<i64: 1>, scalar_prefetch = 0 : i64, scratch_operands = 0 : i64, tpu.core_type = #tpu.core_type<tc>, window_params = [{transform_indices = @transform_0, window_bounds = array<i64: 32, 4>}, {transform_indices = @transform_1, window_bounds = array<i64: 32, 4>}, {transform_indices = @transform_2, window_bounds = array<i64: 16, 4>}, {pipeline_mode = #tpu.pipeline_mode<synchronous>, transform_indices = @transform_3, window_bounds = array<i64: 4, 32>}, {pipeline_mode = #tpu.pipeline_mode<synchronous>, transform_indices = @transform_4, window_bounds = array<i64: 4, 32>}, {pipeline_mode = #tpu.pipeline_mode<synchronous>, transform_indices = @transform_5, window_bounds = array<i64: 1, 32>}, {pipeline_mode = #tpu.pipeline_mode<synchronous>, transform_indices = @transform_6, window_bounds = array<i64: 8, 16>}, {pipeline_mode = #tpu.pipeline_mode<synchronous>, transform_indices = @transform_7, window_bounds = array<i64: 32, 4>}, {pipeline_mode = #tpu.pipeline_mode<synchronous>, transform_indices = @transform_8, window_bounds = array<i64: 4, 4>}, {pipeline_mode = #tpu.pipeline_mode<synchronous>, transform_indices = @transform_9, window_bounds = array<i64: 1, 4>}, {transform_indices = @transform_10, window_bounds = array<i64: 16, 4>}]} {
    %c0 = arith.constant 0 : index
    %c0_0 = arith.constant 0 : index
    %0 = vector.load %arg1[%c0, %c0_0] : memref<32x4xbf16, #tpu.memory_space<vmem>>, vector<32x4xbf16>
    %c0_1 = arith.constant 0 : index
    %c0_2 = arith.constant 0 : index
    %1 = vector.load %arg4[%c0_1, %c0_2] : memref<4x32xbf16, #tpu.memory_space<vmem>>, vector<4x32xbf16>
    %cst = arith.constant dense<0.000000e+00> : vector<32x32xf32>
    %2 = tpu.matmul %0, %1, %cst {dimension_numbers = #tpu.dot_dimension_numbers<[1], [0], [0], [1], [0, 0, 1, 1], [], []>} : vector<32x4xbf16>, vector<4x32xbf16>, vector<32x32xf32> -> vector<32x32xf32>
    %c0_3 = arith.constant 0 : index
    %c0_4 = arith.constant 0 : index
    %3 = vector.load %arg2[%c0_3, %c0_4] : memref<32x4xbf16, #tpu.memory_space<vmem>>, vector<32x4xbf16>
    %c0_5 = arith.constant 0 : index
    %c0_6 = arith.constant 0 : index
    %4 = vector.load %arg5[%c0_5, %c0_6] : memref<4x32xbf16, #tpu.memory_space<vmem>>, vector<4x32xbf16>
    %cst_7 = arith.constant dense<0.000000e+00> : vector<32x32xf32>
    %5 = tpu.matmul %3, %4, %cst_7 {dimension_numbers = #tpu.dot_dimension_numbers<[1], [0], [0], [1], [0, 0, 1, 1], [], []>} : vector<32x4xbf16>, vector<4x32xbf16>, vector<32x32xf32> -> vector<32x32xf32>
    %6 = arith.addf %2, %5 : vector<32x32xf32>
    %c0_8 = arith.constant 0 : index
    %c0_9 = arith.constant 0 : index
    %7 = vector.load %arg6[%c0_8, %c0_9] : memref<1x32xf32, #tpu.memory_space<vmem>>, vector<1x32xf32>
    %8 = vector.broadcast %7 : vector<1x32xf32> to vector<32x32xf32>
    %9 = arith.addf %6, %8 : vector<32x32xf32>
    %cst_10 = arith.constant 0.000000e+00 : f32
    %10 = vector.broadcast %cst_10 : f32 to vector<32x32xf32>
    %11 = arith.maximumf %9, %10 : vector<32x32xf32>
    %12 = arith.truncf %11 : vector<32x32xf32> to vector<32x32xbf16>
    %c0_11 = arith.constant 0 : index
    %c0_12 = arith.constant 0 : index
    %13 = vector.load %arg8[%c0_11, %c0_12] : memref<32x4xbf16, #tpu.memory_space<vmem>>, vector<32x4xbf16>
    %cst_13 = arith.constant dense<0.000000e+00> : vector<32x4xf32>
    %14 = tpu.matmul %12, %13, %cst_13 {dimension_numbers = #tpu.dot_dimension_numbers<[1], [0], [0], [1], [0, 0, 1, 1], [], []>} : vector<32x32xbf16>, vector<32x4xbf16>, vector<32x4xf32> -> vector<32x4xf32>
    %15 = vector.shape_cast %14 : vector<32x4xf32> to vector<2x16x4xf32>
    %c0_14 = arith.constant 0 : index
    %c0_15 = arith.constant 0 : index
    %16 = vector.load %arg7[%c0_14, %c0_15] : memref<8x16xbf16, #tpu.memory_space<vmem>>, vector<8x16xbf16>
    %17 = arith.extf %16 : vector<8x16xbf16> to vector<8x16xf32>
    %18 = vector.shape_cast %17 : vector<8x16xf32> to vector<1x8x16xf32>
    %19 = vector.broadcast %18 : vector<1x8x16xf32> to vector<2x8x16xf32>
    "tpu.trace_start"() <{level = 10 : i32, message = "bpl,blc->bpc"}> : () -> ()
    %cst_16 = arith.constant dense<0.000000e+00> : vector<2x8x4xf32>
    %20 = tpu.matmul %19, %15, %cst_16 {dimension_numbers = #tpu.dot_dimension_numbers<[2], [1], [1], [2], [0, 0, 0, 1, 1, 2], [0], [0]>} : vector<2x8x16xf32>, vector<2x16x4xf32>, vector<2x8x4xf32> -> vector<2x8x4xf32>
    "tpu.trace_stop"() : () -> ()
    %21 = vector.shape_cast %20 : vector<2x8x4xf32> to vector<16x4xf32>
    %c0_17 = arith.constant 0 : index
    %c0_18 = arith.constant 0 : index
    %22 = vector.load %arg3[%c0_17, %c0_18] : memref<16x4xbf16, #tpu.memory_space<vmem>>, vector<16x4xbf16>
    %c0_19 = arith.constant 0 : index
    %c0_20 = arith.constant 0 : index
    %23 = vector.load %arg9[%c0_19, %c0_20] : memref<4x4xbf16, #tpu.memory_space<vmem>>, vector<4x4xbf16>
    %cst_21 = arith.constant dense<0.000000e+00> : vector<16x4xf32>
    %24 = tpu.matmul %22, %23, %cst_21 {dimension_numbers = #tpu.dot_dimension_numbers<[1], [0], [0], [1], [0, 0, 1, 1], [], []>} : vector<16x4xbf16>, vector<4x4xbf16>, vector<16x4xf32> -> vector<16x4xf32>
    %25 = arith.addf %21, %24 : vector<16x4xf32>
    %c0_22 = arith.constant 0 : index
    %c0_23 = arith.constant 0 : index
    %26 = vector.load %arg10[%c0_22, %c0_23] : memref<1x4xf32, #tpu.memory_space<vmem>>, vector<1x4xf32>
    %27 = vector.broadcast %26 : vector<1x4xf32> to vector<16x4xf32>
    %28 = arith.addf %25, %27 : vector<16x4xf32>
    %c0_24 = arith.constant 0 : index
    %c0_25 = arith.constant 0 : index
    %29 = vector.load %arg11[%c0_24, %c0_25] : memref<16x4xf32, #tpu.memory_space<vmem>>, vector<16x4xf32>
    tpu.vector_store %arg11[%c0_24, %c0_25], %28 {strides = array<i32>} : memref<16x4xf32, #tpu.memory_space<vmem>>, vector<16x4xf32>,
    return
  }
  func.func @transform_0(%arg0: i32) -> (i32, i32) {
    %c0_i32 = arith.constant 0 : i32
    %c0_i32_0 = arith.constant 0 : i32
    return %arg0, %c0_i32 : i32, i32
  }
  func.func @transform_1(%arg0: i32) -> (i32, i32) {
    %c0_i32 = arith.constant 0 : i32
    %c0_i32_0 = arith.constant 0 : i32
    return %arg0, %c0_i32 : i32, i32
  }
  func.func @transform_2(%arg0: i32) -> (i32, i32) {
    %c0_i32 = arith.constant 0 : i32
    %c0_i32_0 = arith.constant 0 : i32
    return %arg0, %c0_i32 : i32, i32
  }
  func.func @transform_3(%arg0: i32) -> (i32, i32) {
    %c0_i32 = arith.constant 0 : i32
    %c0_i32_0 = arith.constant 0 : i32
    %c0_i32_1 = arith.constant 0 : i32
    return %c0_i32, %c0_i32_0 : i32, i32
  }
  func.func @transform_4(%arg0: i32) -> (i32, i32) {
    %c0_i32 = arith.constant 0 : i32
    %c0_i32_0 = arith.constant 0 : i32
    %c0_i32_1 = arith.constant 0 : i32
    return %c0_i32, %c0_i32_0 : i32, i32
  }
  func.func @transform_5(%arg0: i32) -> (i32, i32) {
    %c0_i32 = arith.constant 0 : i32
    %c0_i32_0 = arith.constant 0 : i32
    %c0_i32_1 = arith.constant 0 : i32
    return %c0_i32, %c0_i32_0 : i32, i32
  }
  func.func @transform_6(%arg0: i32) -> (i32, i32) {
    %c0_i32 = arith.constant 0 : i32
    %c0_i32_0 = arith.constant 0 : i32
    %c0_i32_1 = arith.constant 0 : i32
    return %c0_i32, %c0_i32_0 : i32, i32
  }
  func.func @transform_7(%arg0: i32) -> (i32, i32) {
    %c0_i32 = arith.constant 0 : i32
    %c0_i32_0 = arith.constant 0 : i32
    %c0_i32_1 = arith.constant 0 : i32
    return %c0_i32, %c0_i32_0 : i32, i32
  }
  func.func @transform_8(%arg0: i32) -> (i32, i32) {
    %c0_i32 = arith.constant 0 : i32
    %c0_i32_0 = arith.constant 0 : i32
    %c0_i32_1 = arith.constant 0 : i32
    return %c0_i32, %c0_i32_0 : i32, i32
  }
  func.func @transform_9(%arg0: i32) -> (i32, i32) {
    %c0_i32 = arith.constant 0 : i32
    %c0_i32_0 = arith.constant 0 : i32
    %c0_i32_1 = arith.constant 0 : i32
    return %c0_i32, %c0_i32_0 : i32, i32
  }
  func.func @transform_10(%arg0: i32) -> (i32, i32) {
    %c0_i32 = arith.constant 0 : i32
    %c0_i32_0 = arith.constant 0 : i32
    return %arg0, %c0_i32 : i32, i32
  }
}

</mosaic_0001>

<llo_original>
// kernel: tpu_custom_call.1
$region0: #{tpu_custom_call.1}
  #allocation0 [shape = 'u32[]', space=smem, size = 0x4, offset = 0x4, fixed_abs, tag = 'smem constant byte address 0x4 - core index']
  #allocation1 [shape = 'u32[144,128]{1,0:T(1,128)}', space=vmem, size = 0x12000, scoped, tag = 'internal scratch']
  %s0 = inlined_call_operand.vmem [shape: bf16[32,4], index: 0, kind: input, shape index: {}]
  %s1 = inlined_call_operand.vmem [shape: bf16[32,4], index: 1, kind: input, shape index: {}]
  %s2 = inlined_call_operand.vmem [shape: bf16[16,4], index: 2, kind: input, shape index: {}]
  %s3 = inlined_call_operand.vmem [shape: bf16[4,32], index: 3, kind: input, shape index: {}]
  %s4 = inlined_call_operand.vmem [shape: bf16[4,32], index: 4, kind: input, shape index: {}]
  %s5 = inlined_call_operand.vmem [shape: f32[1,32], index: 5, kind: input, shape index: {}]
  %s6 = inlined_call_operand.vmem [shape: bf16[8,16], index: 6, kind: input, shape index: {}]
  %s7 = inlined_call_operand.vmem [shape: bf16[32,4], index: 7, kind: input, shape index: {}]
  %s8 = inlined_call_operand.vmem [shape: bf16[4,4], index: 8, kind: input, shape index: {}]
  %s9 = inlined_call_operand.vmem [shape: f32[1,4], index: 9, kind: input, shape index: {}]
  %s10 = inlined_call_operand.vmem [shape: f32[16,4], index: 10, kind: output, shape index: {}]
  %s11 = sld [smem:[#allocation0]]
  $region50: #{tpu_custom_call.1} parent=0
    _
  %s13 = ssub.s32 1, %s11
  %s14 = scalar_select 0, %s13, %s11
  // Predicated region
  $region2: #{tpu_custom_call.1} parent=0 // pred_check
    _
  $region3: #{tpu_custom_call.1} parent=0 // pred_check_branch
    %16 = sbr.rel (0) target = $region5
  $region4: #{tpu_custom_call.1} parent=0 // pred_region
    _
  $region5: #{tpu_custom_call.1} parent=0 // pred_fallthru
    _
  // Predicated region
  $region6: #{tpu_custom_call.1} parent=0 // pred_check
    _
  $region7: #{tpu_custom_call.1} parent=0 // pred_check_branch
    %18 = sbr.rel (0) target = $region9
  $region8: #{tpu_custom_call.1} parent=0 // pred_region
    _
  $region9: #{tpu_custom_call.1} parent=0 // pred_fallthru
    _
  // Predicated region
  $region10: #{tpu_custom_call.1} parent=0 // pred_check
    _
  $region11: #{tpu_custom_call.1} parent=0 // pred_check_branch
    %20 = sbr.rel (0) target = $region13
  $region12: #{tpu_custom_call.1} parent=0 // pred_region
    _
  $region13: #{tpu_custom_call.1} parent=0 // pred_fallthru
    _
  // Predicated region
  $region14: #{tpu_custom_call.1} parent=0 // pred_check
    _
  $region15: #{tpu_custom_call.1} parent=0 // pred_check_branch
    %22 = sbr.rel (0) target = $region17
  $region16: #{tpu_custom_call.1} parent=0 // pred_region
    _
  $region17: #{tpu_custom_call.1} parent=0 // pred_fallthru
    _
  // Predicated region
  $region18: #{tpu_custom_call.1} parent=0 // pred_check
    _
  $region19: #{tpu_custom_call.1} parent=0 // pred_check_branch
    %24 = sbr.rel (0) target = $region21
  $region20: #{tpu_custom_call.1} parent=0 // pred_region
    _
  $region21: #{tpu_custom_call.1} parent=0 // pred_fallthru
    _
  // Predicated region
  $region22: #{tpu_custom_call.1} parent=0 // pred_check
    _
  $region23: #{tpu_custom_call.1} parent=0 // pred_check_branch
    %26 = sbr.rel (0) target = $region25
  $region24: #{tpu_custom_call.1} parent=0 // pred_region
    _
  $region25: #{tpu_custom_call.1} parent=0 // pred_fallthru
    _
  // Predicated region
  $region26: #{tpu_custom_call.1} parent=0 // pred_check
    _
  $region27: #{tpu_custom_call.1} parent=0 // pred_check_branch
    %28 = sbr.rel (0) target = $region29
  $region28: #{tpu_custom_call.1} parent=0 // pred_region
    _
  $region29: #{tpu_custom_call.1} parent=0 // pred_fallthru
    _
  // Predicated region
  $region30: #{tpu_custom_call.1} parent=0 // pred_check
    _
  $region31: #{tpu_custom_call.1} parent=0 // pred_check_branch
    %30 = sbr.rel (0) target = $region33
  $region32: #{tpu_custom_call.1} parent=0 // pred_region
    _
  $region33: #{tpu_custom_call.1} parent=0 // pred_fallthru
    _
  // Predicated region
  $region34: #{tpu_custom_call.1} parent=0 // pred_check
    _
  $region35: #{tpu_custom_call.1} parent=0 // pred_check_branch
    %32 = sbr.rel (0) target = $region37
  $region36: #{tpu_custom_call.1} parent=0 // pred_region
    _
  $region37: #{tpu_custom_call.1} parent=0 // pred_fallthru
    _
  // Predicated region
  $region38: #{tpu_custom_call.1} parent=0 // pred_check
    _
  $region39: #{tpu_custom_call.1} parent=0 // pred_check_branch
    %34 = sbr.rel (0) target = $region41
  $region40: #{tpu_custom_call.1} parent=0 // pred_region
    _
  $region41: #{tpu_custom_call.1} parent=0 // pred_fallthru
    _
  %v36 = vld [vmem:[%s0] sm:$0xf]
  %v37 = vld [vmem:[%s0 + $0x4] sm:$0xf]
  %v38 = vld [vmem:[%s0 + $0x8] sm:$0xf]
  %v39 = vld [vmem:[%s0 + $0xc] sm:$0xf]
  %v40 = vld [vmem:[%s3] sm:$0x3]
  %v41 = vld [vmem:[%s1] sm:$0xf]
  %v42 = vld [vmem:[%s1 + $0x4] sm:$0xf]
  %v43 = vld [vmem:[%s1 + $0x8] sm:$0xf]
  %v44 = vld [vmem:[%s1 + $0xc] sm:$0xf]
  %v45 = vld [vmem:[%s4] sm:$0x3]
  %v50 = vunpack.c.l.b16 %v41
  %v51 = vunpack.c.l.b16 %v42
  %v52 = vunpack.c.l.b16 %v43
  %v53 = vunpack.c.l.b16 %v44
  %v54 = vpack.c.b16 %v51, %v50
  %v55 = vpack.c.b16 %v53, %v52
  %vm56 = vcmask 31744
  %v58 = vsel %vm56, %v54, 0
  %v61 = vsel %vm56, %v55, 0
  %vm63 = vcmask 1041408
  %v65 = vsel %vm63, %v45, 0
  %67 = vmatprep.subr.bf16.mxu0 0
  %68 = vmatpush1.bf16.msra.mxu0 %v65
  %69 = vmatprep.subr.bf16.mxu0 0
  %70 = vmatpush1.bf16.msra.mxu0 0
  %71 = vmatprep.subr.bf16.mxu0 0
  %72 = vmatpush1.bf16.msra.mxu0 0
  %73 = vmatprep.subr.bf16.mxu0 0
  %74 = vmatpush1.bf16.msra.mxu0 0
  %75 = vmatprep.subr.bf16.mxu0 0
  %76 = vmatpush1.bf16.msra.mxu0 0
  %77 = vmatprep.subr.bf16.mxu0 0
  %78 = vmatpush1.bf16.msra.mxu0 0
  %79 = vmatprep.subr.bf16.mxu0 0
  %80 = vmatpush1.bf16.msra.mxu0 0
  %81 = vmatprep.subr.bf16.mxu0 0
  %82 = vmatpush1.bf16.msra.mxu0 0
  %83 = vmatprep.subr.bf16.mxu0 0
  %84 = vmatpush1.bf16.msra.mxu0 0
  %85 = vmatprep.subr.bf16.mxu0 0
  %86 = vmatpush1.bf16.msra.mxu0 0
  %87 = vmatprep.subr.bf16.mxu0 0
  %88 = vmatpush1.bf16.msra.mxu0 0
  %89 = vmatprep.subr.bf16.mxu0 0
  %90 = vmatpush1.bf16.msra.mxu0 0
  %91 = vmatprep.subr.bf16.mxu0 0
  %92 = vmatpush1.bf16.msra.mxu0 0
  %93 = vmatprep.subr.bf16.mxu0 0
  %94 = vmatpush1.bf16.msra.mxu0 0
  %95 = vmatprep.subr.bf16.mxu0 0
  %96 = vmatpush1.bf16.msra.mxu0 0
  %97 = vmatprep.subr.bf16.mxu0 0
  %98 = vmatpush1.bf16.msra.mxu0 0
  %99 = vmatprep.mubr.bf16.mxu0 0
  %100 = vmatmul.mubr.bf16.gmra.mrb[0].mxu0 %v58
  %v101 = vpop.f32.mrb[0].mxu0
  %v102 = vadd.f32 0.0, %v101
  %v103 = vpop.f32.mrb[0].mxu0
  %v104 = vpop.f32.mrb[0].mxu0
  %v105 = vadd.f32 0.0, %v104
  %v106 = vpop.f32.mrb[0].mxu0
  %107 = vmatprep.mubr.bf16.mxu0 0
  %108 = vmatmul.mubr.bf16.gmra.mrb[0].mxu0 %v61
  %v109 = vpop.f32.mrb[0].mxu0
  %v110 = vadd.f32 0.0, %v109
  %v111 = vpop.f32.mrb[0].mxu0
  %v112 = vpop.f32.mrb[0].mxu0
  %v113 = vadd.f32 0.0, %v112
  %v114 = vpop.f32.mrb[0].mxu0
  %115 = vdwg.mxu0
  %v120 = vunpack.c.l.b16 %v36
  %v121 = vunpack.c.l.b16 %v37
  %v122 = vunpack.c.l.b16 %v38
  %v123 = vunpack.c.l.b16 %v39
  %v124 = vpack.c.b16 %v121, %v120
  %v125 = vpack.c.b16 %v123, %v122
  %v127 = vsel %vm56, %v124, 0
  %v130 = vsel %vm56, %v125, 0
  %v133 = vsel %vm63, %v40, 0
  %135 = vmatprep.subr.bf16.mxu0 0
  %136 = vmatpush1.bf16.msra.mxu0 %v133
  %137 = vmatprep.subr.bf16.mxu0 0
  %138 = vmatpush1.bf16.msra.mxu0 0
  %139 = vmatprep.subr.bf16.mxu0 0
  %140 = vmatpush1.bf16.msra.mxu0 0
  %141 = vmatprep.subr.bf16.mxu0 0
  %142 = vmatpush1.bf16.msra.mxu0 0
  %143 = vmatprep.subr.bf16.mxu0 0
  %144 = vmatpush1.bf16.msra.mxu0 0
  %145 = vmatprep.subr.bf16.mxu0 0
  %146 = vmatpush1.bf16.msra.mxu0 0
  %147 = vmatprep.subr.bf16.mxu0 0
  %148 = vmatpush1.bf16.msra.mxu0 0
  %149 = vmatprep.subr.bf16.mxu0 0
  %150 = vmatpush1.bf16.msra.mxu0 0
  %151 = vmatprep.subr.bf16.mxu0 0
  %152 = vmatpush1.bf16.msra.mxu0 0
  %153 = vmatprep.subr.bf16.mxu0 0
  %154 = vmatpush1.bf16.msra.mxu0 0
  %155 = vmatprep.subr.bf16.mxu0 0
  %156 = vmatpush1.bf16.msra.mxu0 0
  %157 = vmatprep.subr.bf16.mxu0 0
  %158 = vmatpush1.bf16.msra.mxu0 0
  %159 = vmatprep.subr.bf16.mxu0 0
  %160 = vmatpush1.bf16.msra.mxu0 0
  %161 = vmatprep.subr.bf16.mxu0 0
  %162 = vmatpush1.bf16.msra.mxu0 0
  %163 = vmatprep.subr.bf16.mxu0 0
  %164 = vmatpush1.bf16.msra.mxu0 0
  %165 = vmatprep.subr.bf16.mxu0 0
  %166 = vmatpush1.bf16.msra.mxu0 0
  %167 = vmatprep.mubr.bf16.mxu0 0
  %168 = vmatmul.mubr.bf16.gmra.mrb[0].mxu0 %v127
  %v169 = vpop.f32.mrb[0].mxu0
  %v170 = vadd.f32 %v102, %v169
  %v171 = vpop.f32.mrb[0].mxu0
  %v172 = vpop.f32.mrb[0].mxu0
  %v173 = vadd.f32 %v105, %v172
  %v174 = vpop.f32.mrb[0].mxu0
  %175 = vmatprep.mubr.bf16.mxu0 0
  %176 = vmatmul.mubr.bf16.gmra.mrb[0].mxu0 %v130
  %v177 = vpop.f32.mrb[0].mxu0
  %v178 = vadd.f32 %v110, %v177
  %v179 = vpop.f32.mrb[0].mxu0
  %v180 = vpop.f32.mrb[0].mxu0
  %v181 = vadd.f32 %v113, %v180
  %v182 = vpop.f32.mrb[0].mxu0
  %183 = vdwg.mxu0
  %v184 = vld [vmem:[%s5] sm:$0x1]
  %v186 = vlaneseq
  %v187 = vshrl.u32 %v186, 7
  %v188 = vsub.s32 0, %v187
  %v189 = vrot.slane %v184, %v188
  %v191 = vadd.f32 %v170, %v189
  %v192 = vadd.f32 %v173, %v189
  %v193 = vadd.f32 %v178, %v189
  %v194 = vadd.f32 %v181, %v189
  %v195 = vmax.f32 %v191, 0.0
  %v196 = vmax.f32 %v192, 0.0
  %v197 = vmax.f32 %v193, 0.0
  %v198 = vmax.f32 %v194, 0.0
  %v199 = vpack.c.bf16 %v196, %v195
  %v200 = vpack.c.bf16 %v198, %v197
  %v201 = vld [vmem:[%s7] sm:$0xf]
  %v202 = vld [vmem:[%s7 + $0x4] sm:$0xf]
  %v203 = vld [vmem:[%s7 + $0x8] sm:$0xf]
  %v204 = vld [vmem:[%s7 + $0xc] sm:$0xf]
  %v209 = vunpack.c.l.b16 %v201
  %v210 = vunpack.c.l.b16 %v202
  %v211 = vunpack.c.l.b16 %v203
  %v212 = vunpack.c.l.b16 %v204
  %v213 = vpack.c.b16 %v210, %v209
  %v214 = vpack.c.b16 %v212, %v211
  %vm217 = vcmask 261120
  %v219 = vsel %vm217, %v199, 0
  %v222 = vsel %vm217, %v200, 0
  %224 = vmatprep.subr.bf16.mxu0 0
  %225 = vmatpush1.bf16.msra.mxu0 %v213
  %226 = vmatprep.subr.bf16.mxu0 0
  %227 = vmatpush1.bf16.msra.mxu0 %v214
  %228 = vmatprep.subr.bf16.mxu0 0
  %229 = vmatpush1.bf16.msra.mxu0 0
  %230 = vmatprep.subr.bf16.mxu0 0
  %231 = vmatpush1.bf16.msra.mxu0 0
  %232 = vmatprep.subr.bf16.mxu0 0
  %233 = vmatpush1.bf16.msra.mxu0 0
  %234 = vmatprep.subr.bf16.mxu0 0
  %235 = vmatpush1.bf16.msra.mxu0 0
  %236 = vmatprep.subr.bf16.mxu0 0
  %237 = vmatpush1.bf16.msra.mxu0 0
  %238 = vmatprep.subr.bf16.mxu0 0
  %239 = vmatpush1.bf16.msra.mxu0 0
  %240 = vmatprep.subr.bf16.mxu0 0
  %241 = vmatpush1.bf16.msra.mxu0 0
  %242 = vmatprep.subr.bf16.mxu0 0
  %243 = vmatpush1.bf16.msra.mxu0 0
  %244 = vmatprep.subr.bf16.mxu0 0
  %245 = vmatpush1.bf16.msra.mxu0 0
  %246 = vmatprep.subr.bf16.mxu0 0
  %247 = vmatpush1.bf16.msra.mxu0 0
  %248 = vmatprep.subr.bf16.mxu0 0
  %249 = vmatpush1.bf16.msra.mxu0 0
  %250 = vmatprep.subr.bf16.mxu0 0
  %251 = vmatpush1.bf16.msra.mxu0 0
  %252 = vmatprep.subr.bf16.mxu0 0
  %253 = vmatpush1.bf16.msra.mxu0 0
  %254 = vmatprep.subr.bf16.mxu0 0
  %255 = vmatpush1.bf16.msra.mxu0 0
  %256 = vmatprep.mubr.bf16.mxu0 0
  %257 = vmatmul.mubr.bf16.gmra.mrb[0].mxu0 %v219
  %v258 = vpop.f32.mrb[0].mxu0
  %v259 = vadd.f32 0.0, %v258
  %v260 = vpop.f32.mrb[0].mxu0
  %v261 = vpop.f32.mrb[0].mxu0
  %v262 = vadd.f32 0.0, %v261
  %v263 = vpop.f32.mrb[0].mxu0
  %264 = vmatprep.mubr.bf16.mxu0 0
  %265 = vmatmul.mubr.bf16.gmra.mrb[0].mxu0 %v222
  %v266 = vpop.f32.mrb[0].mxu0
  %v267 = vadd.f32 0.0, %v266
  %v268 = vpop.f32.mrb[0].mxu0
  %v269 = vpop.f32.mrb[0].mxu0
  %v270 = vadd.f32 0.0, %v269
  %v271 = vpop.f32.mrb[0].mxu0
  %272 = vdwg.mxu0
  %v273 = vld [vmem:[%s6] sm:$0xf]
  %v274 = vunpack.c.l.bf16 %v273
  %vm275 = vcmask 130048
  %v277 = vsel %vm275, %v274, 0
  %279 = vmatprep.subr.mxu0 0.0
  %280 = vmatpush1.msra.mxu0 %v259
  %281 = vmatprep.subr.mxu0 0.0
  %282 = vmatpush1.msra.mxu0 %v262
  %283 = vmatprep.subr.mxu0 0.0
  %284 = vmatpush1.msra.mxu0 0.0
  %285 = vmatprep.subr.mxu0 0.0
  %286 = vmatpush1.msra.mxu0 0.0
  %287 = vmatprep.subr.mxu0 0.0
  %288 = vmatpush1.msra.mxu0 0.0
  %289 = vmatprep.subr.mxu0 0.0
  %290 = vmatpush1.msra.mxu0 0.0
  %291 = vmatprep.subr.mxu0 0.0
  %292 = vmatpush1.msra.mxu0 0.0
  %293 = vmatprep.subr.mxu0 0.0
  %294 = vmatpush1.msra.mxu0 0.0
  %295 = vmatprep.subr.mxu0 0.0
  %296 = vmatpush1.msra.mxu0 0.0
  %297 = vmatprep.subr.mxu0 0.0
  %298 = vmatpush1.msra.mxu0 0.0
  %299 = vmatprep.subr.mxu0 0.0
  %300 = vmatpush1.msra.mxu0 0.0
  %301 = vmatprep.subr.mxu0 0.0
  %302 = vmatpush1.msra.mxu0 0.0
  %303 = vmatprep.subr.mxu0 0.0
  %304 = vmatpush1.msra.mxu0 0.0
  %305 = vmatprep.subr.mxu0 0.0
  %306 = vmatpush1.msra.mxu0 0.0
  %307 = vmatprep.subr.mxu0 0.0
  %308 = vmatpush1.msra.mxu0 0.0
  %309 = vmatprep.subr.mxu0 0.0
  %310 = vmatpush1.msra.mxu0 0.0
  %311 = vmatprep.subr.mxu0 0.0
  %312 = vmatpush1.msra.mxu0 0.0
  %313 = vmatprep.subr.mxu0 0.0
  %314 = vmatpush1.msra.mxu0 0.0
  %315 = vmatprep.subr.mxu0 0.0
  %316 = vmatpush1.msra.mxu0 0.0
  %317 = vmatprep.subr.mxu0 0.0
  %318 = vmatpush1.msra.mxu0 0.0
  %319 = vmatprep.subr.mxu0 0.0
  %320 = vmatpush1.msra.mxu0 0.0
  %321 = vmatprep.subr.mxu0 0.0
  %322 = vmatpush1.msra.mxu0 0.0
  %323 = vmatprep.subr.mxu0 0.0
  %324 = vmatpush1.msra.mxu0 0.0
  %325 = vmatprep.subr.mxu0 0.0
  %326 = vmatpush1.msra.mxu0 0.0
  %327 = vmatprep.subr.mxu0 0.0
  %328 = vmatpush1.msra.mxu0 0.0
  %329 = vmatprep.subr.mxu0 0.0
  %330 = vmatpush1.msra.mxu0 0.0
  %331 = vmatprep.subr.mxu0 0.0
  %332 = vmatpush1.msra.mxu0 0.0
  %333 = vmatprep.subr.mxu0 0.0
  %334 = vmatpush1.msra.mxu0 0.0
  %335 = vmatprep.subr.mxu0 0.0
  %336 = vmatpush1.msra.mxu0 0.0
  %337 = vmatprep.subr.mxu0 0.0
  %338 = vmatpush1.msra.mxu0 0.0
  %339 = vmatprep.subr.mxu0 0.0
  %340 = vmatpush1.msra.mxu0 0.0
  %341 = vmatprep.subr.mxu0 0.0
  %342 = vmatpush1.msra.mxu0 0.0
  %343 = vmatprep.mubr.f32.mxu0 0.0
  %344 = vmatmul.mubr.f32.gmra.mrb[0].mxu0 %v277
  %v345 = vpop.f32.mrb[0].mxu0
  %v346 = vadd.f32 0.0, %v345
  %v347 = vpop.f32.mrb[0].mxu0
  %348 = vdwg.mxu0
  %349 = vmatprep.subr.mxu0 0.0
  %350 = vmatpush1.msra.mxu0 %v267
  %351 = vmatprep.subr.mxu0 0.0
  %352 = vmatpush1.msra.mxu0 %v270
  %353 = vmatprep.subr.mxu0 0.0
  %354 = vmatpush1.msra.mxu0 0.0
  %355 = vmatprep.subr.mxu0 0.0
  %356 = vmatpush1.msra.mxu0 0.0
  %357 = vmatprep.subr.mxu0 0.0
  %358 = vmatpush1.msra.mxu0 0.0
  %359 = vmatprep.subr.mxu0 0.0
  %360 = vmatpush1.msra.mxu0 0.0
  %361 = vmatprep.subr.mxu0 0.0
  %362 = vmatpush1.msra.mxu0 0.0
  %363 = vmatprep.subr.mxu0 0.0
  %364 = vmatpush1.msra.mxu0 0.0
  %365 = vmatprep.subr.mxu0 0.0
  %366 = vmatpush1.msra.mxu0 0.0
  %367 = vmatprep.subr.mxu0 0.0
  %368 = vmatpush1.msra.mxu0 0.0
  %369 = vmatprep.subr.mxu0 0.0
  %370 = vmatpush1.msra.mxu0 0.0
  %371 = vmatprep.subr.mxu0 0.0
  %372 = vmatpush1.msra.mxu0 0.0
  %373 = vmatprep.subr.mxu0 0.0
  %374 = vmatpush1.msra.mxu0 0.0
  %375 = vmatprep.subr.mxu0 0.0
  %376 = vmatpush1.msra.mxu0 0.0
  %377 = vmatprep.subr.mxu0 0.0
  %378 = vmatpush1.msra.mxu0 0.0
  %379 = vmatprep.subr.mxu0 0.0
  %380 = vmatpush1.msra.mxu0 0.0
  %381 = vmatprep.subr.mxu0 0.0
  %382 = vmatpush1.msra.mxu0 0.0
  %383 = vmatprep.subr.mxu0 0.0
  %384 = vmatpush1.msra.mxu0 0.0
  %385 = vmatprep.subr.mxu0 0.0
  %386 = vmatpush1.msra.mxu0 0.0
  %387 = vmatprep.subr.mxu0 0.0
  %388 = vmatpush1.msra.mxu0 0.0
  %389 = vmatprep.subr.mxu0 0.0
  %390 = vmatpush1.msra.mxu0 0.0
  %391 = vmatprep.subr.mxu0 0.0
  %392 = vmatpush1.msra.mxu0 0.0
  %393 = vmatprep.subr.mxu0 0.0
  %394 = vmatpush1.msra.mxu0 0.0
  %395 = vmatprep.subr.mxu0 0.0
  %396 = vmatpush1.msra.mxu0 0.0
  %397 = vmatprep.subr.mxu0 0.0
  %398 = vmatpush1.msra.mxu0 0.0
  %399 = vmatprep.subr.mxu0 0.0
  %400 = vmatpush1.msra.mxu0 0.0
  %401 = vmatprep.subr.mxu0 0.0
  %402 = vmatpush1.msra.mxu0 0.0
  %403 = vmatprep.subr.mxu0 0.0
  %404 = vmatpush1.msra.mxu0 0.0
  %405 = vmatprep.subr.mxu0 0.0
  %406 = vmatpush1.msra.mxu0 0.0
  %407 = vmatprep.subr.mxu0 0.0
  %408 = vmatpush1.msra.mxu0 0.0
  %409 = vmatprep.subr.mxu0 0.0
  %410 = vmatpush1.msra.mxu0 0.0
  %411 = vmatprep.subr.mxu0 0.0
  %412 = vmatpush1.msra.mxu0 0.0
  %413 = vmatprep.mubr.f32.mxu0 0.0
  %414 = vmatmul.mubr.f32.gmra.mrb[0].mxu0 %v277
  %v415 = vpop.f32.mrb[0].mxu0
  %v416 = vadd.f32 0.0, %v415
  %v417 = vpop.f32.mrb[0].mxu0
  %418 = vdwg.mxu0
  %v419 = vld [vmem:[%s2] sm:$0xf]
  %v420 = vld [vmem:[%s2 + $0x4] sm:$0xf]
  %v421 = vld [vmem:[%s8] sm:$0x3]
  %v424 = vunpack.c.l.b16 %v419
  %v425 = vunpack.c.l.b16 %v420
  %v426 = vpack.c.b16 %v425, %v424
  %v428 = vsel %vm56, %v426, 0
  %v431 = vsel %vm63, %v421, 0
  %433 = vmatprep.subr.bf16.mxu0 0
  %434 = vmatpush1.bf16.msra.mxu0 %v431
  %435 = vmatprep.subr.bf16.mxu0 0
  %436 = vmatpush1.bf16.msra.mxu0 0
  %437 = vmatprep.subr.bf16.mxu0 0
  %438 = vmatpush1.bf16.msra.mxu0 0
  %439 = vmatprep.subr.bf16.mxu0 0
  %440 = vmatpush1.bf16.msra.mxu0 0
  %441 = vmatprep.subr.bf16.mxu0 0
  %442 = vmatpush1.bf16.msra.mxu0 0
  %443 = vmatprep.subr.bf16.mxu0 0
  %444 = vmatpush1.bf16.msra.mxu0 0
  %445 = vmatprep.subr.bf16.mxu0 0
  %446 = vmatpush1.bf16.msra.mxu0 0
  %447 = vmatprep.subr.bf16.mxu0 0
  %448 = vmatpush1.bf16.msra.mxu0 0
  %449 = vmatprep.subr.bf16.mxu0 0
  %450 = vmatpush1.bf16.msra.mxu0 0
  %451 = vmatprep.subr.bf16.mxu0 0
  %452 = vmatpush1.bf16.msra.mxu0 0
  %453 = vmatprep.subr.bf16.mxu0 0
  %454 = vmatpush1.bf16.msra.mxu0 0
  %455 = vmatprep.subr.bf16.mxu0 0
  %456 = vmatpush1.bf16.msra.mxu0 0
  %457 = vmatprep.subr.bf16.mxu0 0
  %458 = vmatpush1.bf16.msra.mxu0 0
  %459 = vmatprep.subr.bf16.mxu0 0
  %460 = vmatpush1.bf16.msra.mxu0 0
  %461 = vmatprep.subr.bf16.mxu0 0
  %462 = vmatpush1.bf16.msra.mxu0 0
  %463 = vmatprep.subr.bf16.mxu0 0
  %464 = vmatpush1.bf16.msra.mxu0 0
  %465 = vmatprep.mubr.bf16.mxu0 0
  %466 = vmatmul.mubr.bf16.gmra.mrb[0].mxu0 %v428
  %v467 = vpop.f32.mrb[0].mxu0
  %v468 = vadd.f32 0.0, %v467
  %v469 = vpop.f32.mrb[0].mxu0
  %v470 = vpop.f32.mrb[0].mxu0
  %v471 = vadd.f32 0.0, %v470
  %v472 = vpop.f32.mrb[0].mxu0
  %473 = vdwg.mxu0
  %v474 = vadd.f32 %v346, %v468
  %v475 = vadd.f32 %v416, %v471
  %v476 = vld [vmem:[%s9] sm:$0x1]
  %v478 = vlaneseq
  %v479 = vshrl.u32 %v478, 7
  %v480 = vsub.s32 0, %v479
  %v481 = vrot.slane %v476, %v480
  %v483 = vadd.f32 %v474, %v481
  %v484 = vadd.f32 %v475, %v481
  %485 = vst.msk [vmem:[%s10] sm:$0xff] %vm56, %v483
  %486 = vst.msk [vmem:[%s10 + $0x8] sm:$0xff] %vm56, %v484
  // Predicated region
  $region42: #{tpu_custom_call.1} parent=0 // pred_check
    _
  $region43: #{tpu_custom_call.1} parent=0 // pred_check_branch
    %488 = sbr.rel (0) target = $region45
  $region44: #{tpu_custom_call.1} parent=0 // pred_region
    _
  $region45: #{tpu_custom_call.1} parent=0 // pred_fallthru
    _
  // Predicated region
  $region46: #{tpu_custom_call.1} parent=0 // pred_check
    _
  $region47: #{tpu_custom_call.1} parent=0 // pred_check_branch
    %490 = sbr.rel (0) target = $region49
  $region48: #{tpu_custom_call.1} parent=0 // pred_region
    _
  $region49: #{tpu_custom_call.1} parent=0 // pred_fallthru
    _

</llo_original>
